<compile_context>
chip_gen: v6e
topology: v6e:2x2x1
jax: 0.10.0
libtpu: 0.0.40
codegen_flags: <defaults>
</compile_context>

<pallas_src>
import functools

import jax
import jax.numpy as jnp
from jax import lax
from jax.experimental import pallas as pl
from jax.experimental.pallas import tpu as pltpu


def _round_up(x, m):
    return -(-x // m) * m


def _round_down(x, m):
    return (x // m) * m


def _sublane(itemsize):
    """Sublane packing granularity: f32 -> 8, bf16 -> 16, int8/fp8 -> 32."""
    return max(8, 32 // max(int(itemsize), 1))


def _vmem_capacity_bytes():
    """Best-effort per-core VMEM capacity; conservative (v7x) fallback."""
    try:
        cap = int(getattr(pltpu.get_tpu_info(), "vmem_capacity_bytes", 0))
        if cap > 0:
            return cap
    except Exception:
        pass
    return 64 * 1024 * 1024


def _largest_nice_cols(length, cap):
    """Largest c with c | length, c % 128 == 0, c <= cap (length % 128 == 0)."""
    m = length // 128
    e_cap = max(cap // 128, 1)
    best = 1
    i = 1
    while i * i <= m:
        if m % i == 0:
            for e in (i, m // i):
                if best < e <= e_cap:
                    best = e
        i += 1
    return 128 * best


def _plan(R, L, x_itemsize, y_itemsize):
    """Choose (s, tm, tn, lane_chunks, need_mask, vmem_limit) for an (R, L)
    per-row streaming reduction (rows can be split freely; sub-rows are summed
    back in the glue)."""
    vmem_cap = _vmem_capacity_bytes()
    budget = vmem_cap // 4                    # all double-buffered input blocks
    itemsize = max(int(x_itemsize), int(y_itemsize))
    pair_bytes = int(x_itemsize) + int(y_itemsize)
    sub = max(_sublane(x_itemsize), _sublane(y_itemsize))

    per_array_bytes = R * L * itemsize
    max_block_bytes = budget // 4             # per input, per buffer
    # Keep >= ~8 grid steps on large inputs for DMA/compute overlap, but never
    # drop below ~1 MiB blocks (grid-step overhead regime).
    target_block_bytes = min(max_block_bytes, max(1 << 20, per_array_bytes // 8))
    target_elems = max(target_block_bytes // itemsize, sub * 128)

    if L % 128 == 0:
        # Row-split so each sub-row fits entirely in one block's lane extent.
        cols_cap = max(128, min(target_elems // sub, 8192))
        tn = _largest_nice_cols(L, cols_cap)
        s = L // tn
        lane_chunks = 1
        need_mask = False
    elif L * sub * itemsize <= target_block_bytes:
        # Short ragged rows: full lane extent, still no chunking / masking.
        s, tn, lane_chunks, need_mask = 1, L, 1, False
    else:
        # Fallback: lane chunking with a masked tail chunk.
        s = 1
        tn = max(128, min(_round_down(target_elems // sub, 128), 8192))
        lane_chunks = pl.cdiv(L, tn)
        need_mask = (L % tn) != 0

    rows = R * s
    tm_cap = _round_down(max(target_elems // tn, sub), sub)
    if lane_chunks > 1:
        tm_cap = min(tm_cap, 1024)            # bound accumulator RMW per chunk
    if rows <= sub:
        tm = rows                             # full-extent sublane block
    else:
        tm = min(tm_cap, _round_up(rows, sub))

    in_block_bytes = 2 * tm * tn * pair_bytes            # 2 buffers, both inputs
    out_bytes = 3 * 2 * tm * 4                            # three (tm, 1) f32 outs
    vmem_limit = min(vmem_cap - (8 << 20),
                     in_block_bytes + out_bytes + (24 << 20))
    vmem_limit = int(max(vmem_limit, 32 << 20))

    return s, tm, tn, lane_chunks, need_mask, vmem_limit


def _dice_stats(x2d, y2d, plan):
    """x2d, y2d: (rows, cols) native-dtype arrays.  Returns float32 per-row
    (tp, sum_x, sum_y), each shape (rows,)."""
    _, tm, tn, lane_chunks, need_mask, vmem_limit = plan
    rows, cols = x2d.shape
    row_tiles = pl.cdiv(rows, tm)
    out_shape = jax.ShapeDtypeStruct((rows, 1), jnp.float32)

    if lane_chunks == 1:
        # Whole per-row reduction inside one block: write-once outputs, fully
        # parallel row-tile grid (v7x megacore shards it automatically).
        def kernel(x_ref, y_ref, tp_ref, sx_ref, sy_ref):
            x = x_ref[...].astype(jnp.float32)
            y = y_ref[...].astype(jnp.float32)
            tp_ref[...] = jnp.sum(x * y, axis=1, keepdims=True)
            sx_ref[...] = jnp.sum(x, axis=1, keepdims=True)
            sy_ref[...] = jnp.sum(y, axis=1, keepdims=True)

        grid = (row_tiles,)
        in_spec = pl.BlockSpec((tm, tn), lambda i: (i, 0))
        out_spec = pl.BlockSpec((tm, 1), lambda i: (i, 0))
        semantics = ("parallel",)
    else:
        # Lane-chunked accumulation; mask only on the (ragged) tail chunk.
        def kernel(x_ref, y_ref, tp_ref, sx_ref, sy_ref):
            k = pl.program_id(1)

            @pl.when(k == 0)
            def _():
                tp_ref[...] = jnp.zeros_like(tp_ref)
                sx_ref[...] = jnp.zeros_like(sx_ref)
                sy_ref[...] = jnp.zeros_like(sy_ref)

            x = x_ref[...].astype(jnp.float32)
            y = y_ref[...].astype(jnp.float32)

            def accumulate(xv, yv):
                tp_ref[...] += jnp.sum(xv * yv, axis=1, keepdims=True)
                sx_ref[...] += jnp.sum(xv, axis=1, keepdims=True)
                sy_ref[...] += jnp.sum(yv, axis=1, keepdims=True)

            if need_mask:
                @pl.when(k != lane_chunks - 1)
                def _():
                    accumulate(x, y)

                @pl.when(k == lane_chunks - 1)
                def _():
                    col = k * tn + lax.broadcasted_iota(jnp.int32, x.shape, 1)
                    valid = col < cols
                    accumulate(jnp.where(valid, x, 0.0),
                               jnp.where(valid, y, 0.0))
            else:
                accumulate(x, y)

        grid = (row_tiles, lane_chunks)
        in_spec = pl.BlockSpec((tm, tn), lambda i, k: (i, k))
        out_spec = pl.BlockSpec((tm, 1), lambda i, k: (i, 0))
        semantics = ("parallel", "arbitrary")

    tp, sx, sy = pl.pallas_call(
        kernel,
        out_shape=(out_shape, out_shape, out_shape),
        grid_spec=pltpu.PrefetchScalarGridSpec(
            num_scalar_prefetch=0,
            grid=grid,
            in_specs=[in_spec, in_spec],
            out_specs=[out_spec, out_spec, out_spec],
        ),
        compiler_params=pltpu.CompilerParams(
            dimension_semantics=semantics,
            vmem_limit_bytes=vmem_limit,
        ),
    )(x2d, y2d)

    return tp[:, 0], sx[:, 0], sy[:, 0]


@functools.partial(jax.jit, static_argnames=("smooth",))
def soft_dice_loss(x, y, smooth=1.0):
    """SoftDiceLoss.forward with batch_dice=True, do_bg=False, apply_nonlin=None,
    loss_mask=None, for same-shape one-hot targets (b, c, h, w)."""
    B, C, H, W = x.shape
    L = H * W
    R = B * C

    plan = _plan(R, L, x.dtype.itemsize, y.dtype.itemsize)
    s = plan[0]

    # Free, contiguous reshapes only: no transpose / pad / upcast in the wrapper.
    x2d = x.reshape(R * s, L // s)
    y2d = y.reshape(R * s, L // s)

    tp_r, sx_r, sy_r = _dice_stats(x2d, y2d, plan)       # per-sub-row stats

    # batch_dice=True: sum over batch and over the s sub-rows -> per-channel.
    tp = tp_r.reshape(B, C, s).sum(axis=(0, 2))
    sx = sx_r.reshape(B, C, s).sum(axis=(0, 2))
    sy = sy_r.reshape(B, C, s).sum(axis=(0, 2))
    fp = sx - tp          # sum x*(1-y)
    fn = sy - tp          # sum (1-x)*y

    nominator = 2.0 * tp + smooth
    denominator = 2.0 * tp + fp + fn + smooth
    dc = nominator / (denominator + 1e-8)
    dc = dc[1:]           # do_bg=False with batch_dice=True drops background
    # TODO(synk): C == 1 makes dc[1:] empty -> NaN mean, matching the PyTorch module.
    return -jnp.mean(dc)


def _soft_dice_loss_ref(x, y, smooth=1.0):
    """Pure-JAX reference mirroring the PyTorch module (batch_dice, no bg)."""
    x = x.astype(jnp.float32)
    y = y.astype(jnp.float32)
    axes = (0, 2, 3)
    tp = jnp.sum(x * y, axis=axes)
    fp = jnp.sum(x * (1.0 - y), axis=axes)
    fn = jnp.sum((1.0 - x) * y, axis=axes)
    nominator = 2.0 * tp + smooth
    denominator = 2.0 * tp + fp + fn + smooth
    dc = nominator / (denominator + 1e-8)
    return -jnp.mean(dc[1:])


if __name__ == "__main__":
    key = jax.random.PRNGKey(0)
    B, C, H, W = 2, 4, 16, 16

    kx, ky = jax.random.split(key)
    # Predictions in [0, 1] (as if a nonlinearity had already been applied).
    x = jax.random.uniform(kx, (B, C, H, W), dtype=jnp.float32)
    # Target: label map -> one-hot with the same (B, C, H, W) shape.
    labels = jax.random.randint(ky, (B, H, W), 0, C)
    y = jax.nn.one_hot(labels, C, dtype=jnp.float32)          # (B, H, W, C)
    y = jnp.transpose(y, (0, 3, 1, 2))                        # (B, C, H, W)

    loss = soft_dice_loss(x, y, smooth=1.0)
    loss = jax.block_until_ready(loss)

    ref = _soft_dice_loss_ref(x, y, smooth=1.0)
    assert jnp.allclose(loss, ref, atol=1e-5, rtol=1e-5), (loss, ref)

    print("KERNEL_OK")
</pallas_src>

<mosaic_0001>
module attributes {stable_mosaic.version = 11 : i64} {
  func.func @kernel(%arg0: i32, %arg1: memref<8x256xf32, #tpu.memory_space<vmem>>, %arg2: memref<8x256xf32, #tpu.memory_space<vmem>>, %arg3: memref<8x1xf32, #tpu.memory_space<vmem>>, %arg4: memref<8x1xf32, #tpu.memory_space<vmem>>, %arg5: memref<8x1xf32, #tpu.memory_space<vmem>>) attributes {dimension_semantics = [#tpu.dimension_semantics<parallel>], iteration_bounds = array<i64: 1>, scalar_prefetch = 0 : i64, scratch_operands = 0 : i64, tpu.core_type = #tpu.core_type<tc>, window_params = [{transform_indices = @transform_0, window_bounds = array<i64: 8, 256>}, {transform_indices = @transform_1, window_bounds = array<i64: 8, 256>}, {transform_indices = @transform_2, window_bounds = array<i64: 8, 1>}, {transform_indices = @transform_3, window_bounds = array<i64: 8, 1>}, {transform_indices = @transform_4, window_bounds = array<i64: 8, 1>}]} {
    %c0 = arith.constant 0 : index
    %c0_0 = arith.constant 0 : index
    %0 = vector.load %arg1[%c0, %c0_0] : memref<8x256xf32, #tpu.memory_space<vmem>>, vector<8x256xf32>
    %c0_1 = arith.constant 0 : index
    %c0_2 = arith.constant 0 : index
    %1 = vector.load %arg2[%c0_1, %c0_2] : memref<8x256xf32, #tpu.memory_space<vmem>>, vector<8x256xf32>
    %2 = arith.mulf %0, %1 : vector<8x256xf32>
    %cst = arith.constant dense<0.000000e+00> : vector<8xf32>
    %3 = vector.multi_reduction <add>, %2, %cst [1] : vector<8x256xf32> to vector<8xf32>
    %4 = vector.shape_cast %3 : vector<8xf32> to vector<8x1xf32>
    %c0_3 = arith.constant 0 : index
    %c0_4 = arith.constant 0 : index
    %5 = vector.load %arg3[%c0_3, %c0_4] : memref<8x1xf32, #tpu.memory_space<vmem>>, vector<8x1xf32>
    tpu.vector_store %arg3[%c0_3, %c0_4], %4 {strides = array<i32>} : memref<8x1xf32, #tpu.memory_space<vmem>>, vector<8x1xf32>,
    %cst_5 = arith.constant dense<0.000000e+00> : vector<8xf32>
    %6 = vector.multi_reduction <add>, %0, %cst_5 [1] : vector<8x256xf32> to vector<8xf32>
    %7 = vector.shape_cast %6 : vector<8xf32> to vector<8x1xf32>
    %c0_6 = arith.constant 0 : index
    %c0_7 = arith.constant 0 : index
    %8 = vector.load %arg4[%c0_6, %c0_7] : memref<8x1xf32, #tpu.memory_space<vmem>>, vector<8x1xf32>
    tpu.vector_store %arg4[%c0_6, %c0_7], %7 {strides = array<i32>} : memref<8x1xf32, #tpu.memory_space<vmem>>, vector<8x1xf32>,
    %cst_8 = arith.constant dense<0.000000e+00> : vector<8xf32>
    %9 = vector.multi_reduction <add>, %1, %cst_8 [1] : vector<8x256xf32> to vector<8xf32>
    %10 = vector.shape_cast %9 : vector<8xf32> to vector<8x1xf32>
    %c0_9 = arith.constant 0 : index
    %c0_10 = arith.constant 0 : index
    %11 = vector.load %arg5[%c0_9, %c0_10] : memref<8x1xf32, #tpu.memory_space<vmem>>, vector<8x1xf32>
    tpu.vector_store %arg5[%c0_9, %c0_10], %10 {strides = array<i32>} : memref<8x1xf32, #tpu.memory_space<vmem>>, vector<8x1xf32>,
    return
  }
  func.func @transform_0(%arg0: i32) -> (i32, i32) {
    %c0_i32 = arith.constant 0 : i32
    %c0_i32_0 = arith.constant 0 : i32
    return %arg0, %c0_i32 : i32, i32
  }
  func.func @transform_1(%arg0: i32) -> (i32, i32) {
    %c0_i32 = arith.constant 0 : i32
    %c0_i32_0 = arith.constant 0 : i32
    return %arg0, %c0_i32 : i32, i32
  }
  func.func @transform_2(%arg0: i32) -> (i32, i32) {
    %c0_i32 = arith.constant 0 : i32
    %c0_i32_0 = arith.constant 0 : i32
    return %arg0, %c0_i32 : i32, i32
  }
  func.func @transform_3(%arg0: i32) -> (i32, i32) {
    %c0_i32 = arith.constant 0 : i32
    %c0_i32_0 = arith.constant 0 : i32
    return %arg0, %c0_i32 : i32, i32
  }
  func.func @transform_4(%arg0: i32) -> (i32, i32) {
    %c0_i32 = arith.constant 0 : i32
    %c0_i32_0 = arith.constant 0 : i32
    return %arg0, %c0_i32 : i32, i32
  }
}

</mosaic_0001>

<llo_original>
// kernel: squeeze.3
$region0: #{squeeze.3}
  %s0 = inlined_call_operand.vmem [shape: f32[8], index: 0, kind: input, shape index: {}]
  %s1 = inlined_call_operand.vmem [shape: f32[2,4], index: 1, kind: output, shape index: {}]
  $region1: #{squeeze.3} parent=0
    #allocation0 [shape = 'u8[4096]{0}', space=vmem, size = 0x1000, scoped, tag = 'scoped mem for output reshape']
    #allocation1 [shape = 'u8[4096]{0}', space=vmem, size = 0x1000, scoped, tag = 'scoped mem for input reshape']
    %s3 = sshll.u32 1, 1
    %s4 = ssub.s32 %s3, 1
    %v5 = vld [vmem:[%s0] sm:%s4]
    %6 = vst [vmem:[#allocation1] sm:%s4] %v5
    %v7 = vld [vmem:[#allocation1] sm:$0x1]
    %vm8 = vcmask 31744
    %9 = vst.msk [vmem:[#allocation0] sm:$0x1] %vm8, %v7
    %v10 = vld [vmem:[#allocation1] sm:$0x1]
    %11 = vrot.lane.b32.xlu0 %v10, 124
    %v12 = vpop.permute.xlu0 %11
    %vm13 = vcmask 31744
    %s14 = scalar_lea.vmem [#allocation0], 1
    %15 = vst.msk [vmem:[%s14] sm:$0x1] %vm13, %v12
    %s17 = sshll.u32 1, 2
    %s18 = ssub.s32 %s17, 1
    %v20 = vld [vmem:[#allocation0] sm:%s18]
    %s21 = sshll.u32 1, 2
    %s22 = ssub.s32 %s21, 1
    %23 = vst [vmem:[%s1] sm:%s22] %v20

// kernel: soft_dice_loss.1
$region0: #{soft_dice_loss.1}
  #allocation0 [shape = 'u32[]', space=smem, size = 0x4, offset = 0x4, fixed_abs, tag = 'smem constant byte address 0x4 - core index']
  #allocation1 [shape = 'u32[144,128]{1,0:T(1,128)}', space=vmem, size = 0x12000, scoped, tag = 'internal scratch']
  %s0 = inlined_call_operand.vmem [shape: f32[8,256], index: 0, kind: input, shape index: {}]
  %s1 = inlined_call_operand.vmem [shape: f32[8,256], index: 1, kind: input, shape index: {}]
  %s2 = inlined_call_operand.vmem [shape: f32[8,1], index: 2, kind: output, shape index: {0}]
  %s3 = inlined_call_operand.vmem [shape: f32[8,1], index: 3, kind: output, shape index: {1}]
  %s4 = inlined_call_operand.vmem [shape: f32[8,1], index: 4, kind: output, shape index: {2}]
  %5 = xla_tuple %s2, %s3, %s4
  %s6 = sld [smem:[#allocation0]]
  $region34: #{soft_dice_loss.1} parent=0
    _
  %s8 = ssub.s32 1, %s6
  %s9 = scalar_select 0, %s8, %s6
  // Predicated region
  $region2: #{soft_dice_loss.1} parent=0 // pred_check
    _
  $region3: #{soft_dice_loss.1} parent=0 // pred_check_branch
    %11 = sbr.rel (0) target = $region5
  $region4: #{soft_dice_loss.1} parent=0 // pred_region
    _
  $region5: #{soft_dice_loss.1} parent=0 // pred_fallthru
    _
  // Predicated region
  $region6: #{soft_dice_loss.1} parent=0 // pred_check
    _
  $region7: #{soft_dice_loss.1} parent=0 // pred_check_branch
    %13 = sbr.rel (0) target = $region9
  $region8: #{soft_dice_loss.1} parent=0 // pred_region
    _
  $region9: #{soft_dice_loss.1} parent=0 // pred_fallthru
    _
  %v14 = vld [vmem:[%s0] sm:$0xff]
  %v15 = vld [vmem:[%s0 + $0x8] sm:$0xff]
  %v16 = vld [vmem:[%s1] sm:$0xff]
  %v17 = vld [vmem:[%s1 + $0x8] sm:$0xff]
  %v18 = vmul.f32 %v14, %v16
  %v19 = vmul.f32 %v15, %v17
  %v20 = vadd.f32 %v18, %v19
  %21 = vadd.xlane.f32.xlu0 %v20
  %v22 = vpop.xlane.xlu0 %21
  %vm23 = vcmask 7168
  %24 = vst.msk [vmem:[%s2] sm:$0xff] %vm23, %v22
  %v25 = vadd.f32 %v14, %v15
  %26 = vadd.xlane.f32.xlu0 %v25
  %v27 = vpop.xlane.xlu0 %26
  %28 = vst.msk [vmem:[%s3] sm:$0xff] %vm23, %v27
  %v29 = vadd.f32 %v16, %v17
  %30 = vadd.xlane.f32.xlu0 %v29
  %v31 = vpop.xlane.xlu0 %30
  %32 = vst.msk [vmem:[%s4] sm:$0xff] %vm23, %v31
  // Predicated region
  $region10: #{soft_dice_loss.1} parent=0 // pred_check
    _
  $region11: #{soft_dice_loss.1} parent=0 // pred_check_branch
    %34 = sbr.rel (0) target = $region13
  $region12: #{soft_dice_loss.1} parent=0 // pred_region
    _
  $region13: #{soft_dice_loss.1} parent=0 // pred_fallthru
    _
  // Predicated region
  $region14: #{soft_dice_loss.1} parent=0 // pred_check
    _
  $region15: #{soft_dice_loss.1} parent=0 // pred_check_branch
    %36 = sbr.rel (0) target = $region17
  $region16: #{soft_dice_loss.1} parent=0 // pred_region
    _
  $region17: #{soft_dice_loss.1} parent=0 // pred_fallthru
    _
  // Predicated region
  $region18: #{soft_dice_loss.1} parent=0 // pred_check
    _
  $region19: #{soft_dice_loss.1} parent=0 // pred_check_branch
    %38 = sbr.rel (0) target = $region21
  $region20: #{soft_dice_loss.1} parent=0 // pred_region
    _
  $region21: #{soft_dice_loss.1} parent=0 // pred_fallthru
    _
  // Predicated region
  $region22: #{soft_dice_loss.1} parent=0 // pred_check
    _
  $region23: #{soft_dice_loss.1} parent=0 // pred_check_branch
    %40 = sbr.rel (0) target = $region25
  $region24: #{soft_dice_loss.1} parent=0 // pred_region
    _
  $region25: #{soft_dice_loss.1} parent=0 // pred_fallthru
    _
  // Predicated region
  $region26: #{soft_dice_loss.1} parent=0 // pred_check
    _
  $region27: #{soft_dice_loss.1} parent=0 // pred_check_branch
    %42 = sbr.rel (0) target = $region29
  $region28: #{soft_dice_loss.1} parent=0 // pred_region
    _
  $region29: #{soft_dice_loss.1} parent=0 // pred_fallthru
    _
  // Predicated region
  $region30: #{soft_dice_loss.1} parent=0 // pred_check
    _
  $region31: #{soft_dice_loss.1} parent=0 // pred_check_branch
    %44 = sbr.rel (0) target = $region33
  $region32: #{soft_dice_loss.1} parent=0 // pred_region
    _
  $region33: #{soft_dice_loss.1} parent=0 // pred_fallthru
    _

</llo_original>
